<compile_context>
chip_gen: v5e
topology: v5e:2x2
jax: 0.10.0
libtpu: 0.0.40
codegen_flags: <defaults>
</compile_context>

<pallas_src>
import functools
import math

import jax
import jax.numpy as jnp
from jax.experimental import pallas as pl
from jax.experimental.pallas import tpu as pltpu


def _round_up(x, m):
    return (x + m - 1) // m * m


# ---------------------------------------------------------------------------
# Kernel (small channels): full im2col — one MXU matmul per grid point.
# ---------------------------------------------------------------------------
def _im2col_kernel(x_ref, w_ref, b_ref, o_ref):
    # x_ref: (1, tR, ckk_p)   bf16  -- im2col'ed activation rows (lane-padded)
    # w_ref: (ckk_p, t_co)    bf16  -- folded, pre-scaled combined weight tile
    # b_ref: (1, t_co)        f32   -- pre-scaled combined bias tile
    # o_ref: (1, tR, t_co)    f32
    acc = jnp.dot(x_ref[0], w_ref[...], preferred_element_type=jnp.float32)
    o_ref[0] = (acc + b_ref[...]).astype(o_ref.dtype)


# ---------------------------------------------------------------------------
# Kernel (large channels): kx folded into the contraction, static loop over ky.
# Accumulates directly into the f32 output block initialized with the bias.
# ---------------------------------------------------------------------------
def _kxfold_kernel(x_ref, w_ref, b_ref, o_ref, *, k_taps, tile_h, width):
    # x_ref: (1, 1, (tile_h + K - 1) * W, kcin_p)  bf16  (ky-halo rows included,
    #        rows pre-flattened in the wrapper so per-tap slices are static views)
    # w_ref: (K, kcin_p, t_co)  bf16
    # b_ref: (1, t_co)          f32
    # o_ref: (1, tile_h * W, t_co)  f32
    rows = tile_h * width
    t_co = o_ref.shape[2]
    o_ref[0] = jnp.broadcast_to(b_ref[...], (rows, t_co)).astype(o_ref.dtype)
    for ky in range(k_taps):          # static unroll; slice starts are constants
        xs = x_ref[0, 0, ky * width: ky * width + rows, :]
        o_ref[0] += jnp.dot(xs, w_ref[ky], preferred_element_type=jnp.float32)


# ---------------------------------------------------------------------------
# Tile choosers (VMEM-budget aware).
# ---------------------------------------------------------------------------
def _choose_cout_tile(cout_p, w_rows, budget_bytes=4 << 20):
    # double-buffered bf16 weight block: 2 * w_rows * t_co * 2 bytes <= budget
    t = (budget_bytes // (4 * max(w_rows, 1))) // 128 * 128
    t = max(128, min(cout_p, t))
    while cout_p % t != 0:
        t -= 128
    return t


def _choose_row_tile(rows, target_rows, bytes_per_row, budget_bytes=12 << 20):
    max_rows = max(8, budget_bytes // max(bytes_per_row, 1))
    t = min(target_rows, max_rows, _round_up(rows, 8))
    return max(8, (t // 8) * 8)


def _choose_tile_h(H, W, target_rows, bytes_per_row, budget_bytes=12 << 20):
    max_rows = max(1, budget_bytes // max(bytes_per_row, 1))
    limit_h = max(1, min(target_rows, max_rows) // max(W, 1))
    best = None
    for d in range(1, H + 1):
        if H % d == 0 and (d * W) % 8 == 0 and d <= limit_h:
            best = d
    if best is None:
        # No sublane-aligned divisor tile under the limit; fall back to full H.
        # TODO(synk): for very large odd-width images, pad the flattened row
        # axis to a multiple of 8 instead of holding the whole image in VMEM.
        best = H
    return best


# ---------------------------------------------------------------------------
# Wrapper.
# ---------------------------------------------------------------------------
@functools.partial(jax.jit,
                   static_argnames=("num_kernels", "target_rows", "compute_dtype"))
def inception_block_v1(x_nchw, weights, biases, num_kernels,
                       target_rows=2048, compute_dtype=jnp.bfloat16):
    """weights[i]: (Cout, Cin, k_i, k_i) with k_i = 2*i+1 ; biases[i]: (Cout,)."""
    N, Cin, H, W = x_nchw.shape
    Cout = weights[0].shape[0]
    p = num_kernels - 1
    K = 2 * p + 1

    cout_p = _round_up(Cout, 128)

    # ---- parameter prep (one-time, fused by XLA) ----------------------------
    # Sum the centered zero-padded branch kernels into one K x K kernel and
    # pre-scale by 1/num_kernels (the branch mean).  OIHW -> HWIO.
    w_comb = jnp.zeros((K, K, Cin, Cout), jnp.float32)
    for i, w in enumerate(weights):
        k = 2 * i + 1
        off = p - i
        w_hwio = jnp.transpose(w, (2, 3, 1, 0)).astype(jnp.float32)
        w_comb = w_comb.at[off:off + k, off:off + k, :, :].add(w_hwio)
    w_comb = w_comb * (1.0 / num_kernels)

    b_comb = jnp.sum(jnp.stack(biases, 0), axis=0) * (1.0 / num_kernels)
    b_comb = jnp.pad(b_comb, (0, cout_p - Cout)).reshape(1, cout_p)
    b_comb = b_comb.astype(jnp.float32)

    # ---- activation prep ----------------------------------------------------
    # Early cast: go to the compute dtype BEFORE padding / tap folding so every
    # subsequent HBM pass moves half the bytes.
    x_nhwc = jnp.transpose(x_nchw.astype(compute_dtype), (0, 2, 3, 1))
    x_pad = jnp.pad(x_nhwc, ((0, 0), (p, p), (p, p), (0, 0)))   # (N, Hp, Wp, Cin)

    compiler_params = pltpu.CompilerParams(
        dimension_semantics=("parallel", "parallel", "parallel"),
        vmem_limit_bytes=32 * 1024 * 1024)   # v7x-safe; working set bounded below

    full_im2col = (K * K * Cin) <= 128

    if full_im2col:
        # ---- Path 1: fold BOTH ky and kx into the contraction --------------
        ckk = K * K * Cin
        ckk_p = _round_up(ckk, 128)
        # x_col[n,h,w,(ky*K+kx)*Cin+c] = x_pad[n,h+ky,w+kx,c]
        x_col = jnp.concatenate(
            [x_pad[:, ky:ky + H, kx:kx + W, :]
             for ky in range(K) for kx in range(K)], axis=-1)
        x_col = jnp.pad(x_col, ((0, 0), (0, 0), (0, 0), (0, ckk_p - ckk)))

        t_co = _choose_cout_tile(cout_p, ckk_p)
        rows = H * W
        bytes_per_row = 2 * ckk_p * 2 + 2 * t_co * 4   # dbl-buffered in + out
        t_r = _choose_row_tile(rows, target_rows, bytes_per_row)
        rows_pad = _round_up(rows, t_r)

        x_col = x_col.reshape(N, rows, ckk_p)
        if rows_pad != rows:
            x_col = jnp.pad(x_col, ((0, 0), (0, rows_pad - rows), (0, 0)))

        w_flat = w_comb.reshape(K * K * Cin, Cout)
        w_flat = jnp.pad(w_flat, ((0, ckk_p - ckk), (0, cout_p - Cout)))
        w_flat = w_flat.astype(compute_dtype)

        grid = (N, cout_p // t_co, rows_pad // t_r)
        out = pl.pallas_call(
            _im2col_kernel,
            out_shape=jax.ShapeDtypeStruct((N, rows_pad, cout_p), jnp.float32),
            grid_spec=pltpu.PrefetchScalarGridSpec(
                num_scalar_prefetch=0,
                grid=grid,
                in_specs=[
                    pl.BlockSpec((1, t_r, ckk_p), lambda n, co, r: (n, r, 0)),
                    # TODO(synk): pipeline_mode=pl.Buffered(1) on the constant
                    # weight/bias blocks would halve their VMEM footprint (v7x).
                    pl.BlockSpec((ckk_p, t_co), lambda n, co, r: (0, co)),
                    pl.BlockSpec((1, t_co), lambda n, co, r: (0, co)),
                ],
                out_specs=pl.BlockSpec((1, t_r, t_co), lambda n, co, r: (n, r, co)),
            ),
            compiler_params=compiler_params,
        )(x_col, w_flat, b_comb)
        out = out[:, :rows, :Cout].reshape(N, H, W, Cout)

    else:
        # ---- Path 2: fold kx into the contraction, loop over ky in-kernel --
        kcin = K * Cin
        kcin_p = _round_up(kcin, 128)
        # x_fold[n,h',w,kx*Cin+c] = x_pad[n,h',w+kx,c]   (h' over padded H)
        x_fold = jnp.concatenate(
            [x_pad[:, :, kx:kx + W, :] for kx in range(K)], axis=-1)
        x_fold = jnp.pad(x_fold, ((0, 0), (0, 0), (0, 0), (0, kcin_p - kcin)))

        t_co = _choose_cout_tile(cout_p, K * kcin_p)
        bytes_per_row = 2 * kcin_p * 2 + 2 * t_co * 4
        t_h = _choose_tile_h(H, W, target_rows, bytes_per_row)
        n_ht = H // t_h
        t_hp = t_h + 2 * p

        # Overlapping ky-halo windows per H-tile, rows pre-flattened so the
        # in-kernel per-tap slices are static, aligned views.
        # TODO(synk): replace this materialized gather with an element-offset
        # (pl.Element) BlockSpec window on the H axis to save one HBM round trip.
        x_tiles = jnp.stack(
            [x_fold[:, ht * t_h: ht * t_h + t_hp] for ht in range(n_ht)], axis=1)
        x_tiles = x_tiles.reshape(N, n_ht, t_hp * W, kcin_p)

        w_fold = w_comb.reshape(K, K * Cin, Cout)
        w_fold = jnp.pad(w_fold, ((0, 0), (0, kcin_p - kcin), (0, cout_p - Cout)))
        w_fold = w_fold.astype(compute_dtype)

        grid = (N, cout_p // t_co, n_ht)
        out = pl.pallas_call(
            functools.partial(_kxfold_kernel, k_taps=K, tile_h=t_h, width=W),
            out_shape=jax.ShapeDtypeStruct((N, H * W, cout_p), jnp.float32),
            grid_spec=pltpu.PrefetchScalarGridSpec(
                num_scalar_prefetch=0,
                grid=grid,
                in_specs=[
                    pl.BlockSpec((1, 1, t_hp * W, kcin_p),
                                 lambda n, co, h: (n, h, 0, 0)),
                    pl.BlockSpec((K, kcin_p, t_co), lambda n, co, h: (0, 0, co)),
                    pl.BlockSpec((1, t_co), lambda n, co, h: (0, co)),
                ],
                out_specs=pl.BlockSpec((1, t_h * W, t_co),
                                       lambda n, co, h: (n, h, co)),
            ),
            compiler_params=compiler_params,
        )(x_tiles, w_fold, b_comb)
        out = out[:, :, :Cout].reshape(N, H, W, Cout)

    return jnp.transpose(out, (0, 3, 1, 2)).astype(x_nchw.dtype)   # back to NCHW


# ---------------------------------------------------------------------------
# Reference & params.
# ---------------------------------------------------------------------------
def reference_inception_block(x_nchw, weights, biases, num_kernels):
    """Pure-JAX f32 reference mirroring the PyTorch forward."""
    outs = []
    for i in range(num_kernels):
        o = jax.lax.conv_general_dilated(
            x_nchw, weights[i], window_strides=(1, 1),
            padding=[(i, i), (i, i)],
            dimension_numbers=("NCHW", "OIHW", "NCHW"))
        outs.append(o + biases[i][None, :, None, None])
    return jnp.mean(jnp.stack(outs, axis=-1), axis=-1)


def make_params(key, in_channels, out_channels, num_kernels):
    """kaiming_normal_(mode='fan_out', nonlinearity='relu'); small random biases
    (module init is 0, random biases exercise the bias path)."""
    weights, biases = [], []
    for i in range(num_kernels):
        k = 2 * i + 1
        key, kw, kb = jax.random.split(key, 3)
        fan_out = out_channels * k * k
        std = math.sqrt(2.0 / fan_out)
        w = std * jax.random.normal(kw, (out_channels, in_channels, k, k),
                                    dtype=jnp.float32)
        weights.append(w)
        biases.append(0.1 * jax.random.normal(kb, (out_channels,), jnp.float32))
    return weights, biases


def _run_case(key, N, Cin, Cout, H, W, num_kernels):
    key, kx_key = jax.random.split(key)
    x = jax.random.normal(kx_key, (N, Cin, H, W), dtype=jnp.float32)
    weights, biases = make_params(key, Cin, Cout, num_kernels)

    out = inception_block_v1(x, weights, biases, num_kernels=num_kernels)
    out = jax.block_until_ready(out)
    ref = jax.block_until_ready(
        reference_inception_block(x, weights, biases, num_kernels))

    assert out.shape == (N, Cout, H, W), out.shape
    # bf16 activations/weights with f32 MXU accumulation -> small deviation vs
    # the f32 reference; tolerance widened accordingly.
    assert jnp.allclose(out, ref, rtol=5e-2, atol=5e-2), (
        float(jnp.max(jnp.abs(out - ref))))


if __name__ == "__main__":
    key = jax.random.PRNGKey(0)
    # Case A: small channels -> full-im2col path (K*K*Cin = 100 <= 128).
    key, k_a = jax.random.split(key)
    _run_case(k_a, N=2, Cin=4, Cout=8, H=16, W=16, num_kernels=3)
    # Case B: larger channels -> kx-fold + ky-loop path (K*K*Cin = 400 > 128).
    key, k_b = jax.random.split(key)
    _run_case(k_b, N=2, Cin=16, Cout=8, H=16, W=16, num_kernels=3)

    print("KERNEL_OK")
</pallas_src>

<mosaic_0001>
module attributes {stable_mosaic.version = 11 : i64} {
  func.func @_im2col_kernel(%arg0: i32, %arg1: i32, %arg2: i32, %arg3: memref<1x256x128xbf16, #tpu.memory_space<vmem>>, %arg4: memref<128x128xbf16, #tpu.memory_space<vmem>>, %arg5: memref<1x128xf32, #tpu.memory_space<vmem>>, %arg6: memref<1x256x128xf32, #tpu.memory_space<vmem>>) attributes {dimension_semantics = [#tpu.dimension_semantics<parallel>, #tpu.dimension_semantics<parallel>, #tpu.dimension_semantics<parallel>], iteration_bounds = array<i64: 2, 1, 1>, scalar_prefetch = 0 : i64, scratch_operands = 0 : i64, tpu.core_type = #tpu.core_type<tc>, window_params = [{transform_indices = @transform_0, window_bounds = array<i64: 1, 256, 128>}, {transform_indices = @transform_1, window_bounds = array<i64: 128, 128>}, {transform_indices = @transform_2, window_bounds = array<i64: 1, 128>}, {transform_indices = @transform_3, window_bounds = array<i64: 1, 256, 128>}]} {
    %c0 = arith.constant 0 : index
    %c0_0 = arith.constant 0 : index
    %c0_1 = arith.constant 0 : index
    %0 = vector.load %arg3[%c0, %c0_0, %c0_1] : memref<1x256x128xbf16, #tpu.memory_space<vmem>>, vector<1x256x128xbf16>
    %1 = vector.shape_cast %0 : vector<1x256x128xbf16> to vector<256x128xbf16>
    %c0_2 = arith.constant 0 : index
    %c0_3 = arith.constant 0 : index
    %2 = vector.load %arg4[%c0_2, %c0_3] : memref<128x128xbf16, #tpu.memory_space<vmem>>, vector<128x128xbf16>
    %cst = arith.constant dense<0.000000e+00> : vector<256x128xf32>
    %3 = tpu.matmul %1, %2, %cst {dimension_numbers = #tpu.dot_dimension_numbers<[1], [0], [0], [1], [0, 0, 1, 1], [], []>} : vector<256x128xbf16>, vector<128x128xbf16>, vector<256x128xf32> -> vector<256x128xf32>
    %c0_4 = arith.constant 0 : index
    %c0_5 = arith.constant 0 : index
    %4 = vector.load %arg5[%c0_4, %c0_5] : memref<1x128xf32, #tpu.memory_space<vmem>>, vector<1x128xf32>
    %5 = vector.broadcast %4 : vector<1x128xf32> to vector<256x128xf32>
    %6 = arith.addf %3, %5 : vector<256x128xf32>
    %c0_6 = arith.constant 0 : index
    %c0_7 = arith.constant 0 : index
    %c0_8 = arith.constant 0 : index
    %7 = vector.load %arg6[%c0_6, %c0_7, %c0_8] : memref<1x256x128xf32, #tpu.memory_space<vmem>>, vector<1x256x128xf32>
    %8 = vector.shape_cast %7 : vector<1x256x128xf32> to vector<256x128xf32>
    %9 = vector.shape_cast %6 : vector<256x128xf32> to vector<1x256x128xf32>
    tpu.vector_store %arg6[%c0_6, %c0_7, %c0_8], %9 {strides = array<i32>} : memref<1x256x128xf32, #tpu.memory_space<vmem>>, vector<1x256x128xf32>,
    return
  }
  func.func @transform_0(%arg0: i32, %arg1: i32, %arg2: i32) -> (i32, i32, i32) {
    %c0_i32 = arith.constant 0 : i32
    %c0_i32_0 = arith.constant 0 : i32
    return %arg0, %arg2, %c0_i32 : i32, i32, i32
  }
  func.func @transform_1(%arg0: i32, %arg1: i32, %arg2: i32) -> (i32, i32) {
    %c0_i32 = arith.constant 0 : i32
    %c0_i32_0 = arith.constant 0 : i32
    return %c0_i32, %arg1 : i32, i32
  }
  func.func @transform_2(%arg0: i32, %arg1: i32, %arg2: i32) -> (i32, i32) {
    %c0_i32 = arith.constant 0 : i32
    %c0_i32_0 = arith.constant 0 : i32
    return %c0_i32, %arg1 : i32, i32
  }
  func.func @transform_3(%arg0: i32, %arg1: i32, %arg2: i32) -> (i32, i32, i32) {
    %c0_i32 = arith.constant 0 : i32
    return %arg0, %arg2, %arg1 : i32, i32, i32
  }
}

</mosaic_0001>

<llo_original>
// kernel: inception_block_v1.1
$region0: #{inception_block_v1.1}
  #allocation0 [shape = 'u32[]', space=smem, size = 0x4, offset = 0x4, fixed_abs, tag = 'smem constant byte address 0x4 - core index']
  #allocation1 [shape = 'u32[72,128]{1,0:T(1,128)}', space=vmem, size = 0x9000, scoped, tag = 'internal scratch']
  %s0 = inlined_call_operand.vmem [shape: bf16[2,256,128], index: 0, kind: input, shape index: {}]
  %s1 = inlined_call_operand.vmem [shape: bf16[128,128], index: 1, kind: input, shape index: {}]
  %s2 = inlined_call_operand.vmem [shape: f32[1,128], index: 2, kind: input, shape index: {}]
  %s3 = inlined_call_operand.vmem [shape: f32[2,256,128], index: 3, kind: output, shape index: {}]
  %s4 = sld [smem:[#allocation0]]
  $region45: #{inception_block_v1.1} parent=0
    _
  %s6 = ssub.s32 1, %s4
  %s7 = scalar_select 0, %s6, %s4
  loop: start=0, step=1, limit=4
  $region2: #{inception_block_v1.1} parent=0 // loop_pre_header
    _
  $region3: #{inception_block_v1.1} parent=0 // loop_header
    %s9 = sphi 0, %s13
    %p10 = scmp.ge.s32.totalorder %s9, 4
    %s16 = sphi 0, %s35
    %s17 = sphi 0, %s31
    %s18 = sphi 0, %s27
    %s19 = sphi 0, %s16
    %s20 = sphi 0, %s17
    %s21 = sphi 0, %s18
    %s22 = sphi 0, %s19
    %s23 = sphi 0, %s20
    %s24 = sphi 0, %s21
    %s40 = sphi 0, %s42
    %s43 = sphi 0, %s40
    %s44 = sphi 0, %s43
    %s60 = sphi 0, %s44
    %s66 = sphi 0, %s68
    %s69 = sphi 0, %s66
    %s70 = sphi 0, %s69
    %s86 = sphi 0, %s70
    %s92 = sphi 0, %s94
    %s95 = sphi 0, %s92
    %s96 = sphi 0, %s95
    %s112 = sphi 0, %s96
    %s122 = sphi 0, %s124
    %s125 = sphi 0, %s122
    %s126 = sphi 0, %s125
    %s142 = sphi 0, %s126
  $region4: #{inception_block_v1.1} parent=0 // loop_header_branch
    %12 = sbr.rel (%p10) target = $region8
  $region5: #{inception_block_v1.1} parent=0 // loop_body
    %s14 = ssub.s32 %s9, 1
    %s15 = ssub.s32 %s9, 2
    %s25 = sadd.s32 1, %s18
    %p26 = scmp.ge.s32.totalorder %s25, 1
    %s27 = scalar_select %p26, 0, %s25
    %s28 = sadd.s32 1, %s17
    %s29 = scalar_select %p26, %s28, %s17
    %p30 = scmp.ge.s32.totalorder %s29, 1
    %s31 = scalar_select %p30, 0, %s29
    %s32 = sadd.s32 1, %s16
    %s33 = scalar_select %p30, %s32, %s16
    %p34 = scmp.ge.s32.totalorder %s33, 2
    %s35 = scalar_select %p34, 0, %s33
    %s36 = ssub.s32 %s16, %s35
    %s37 = ssub.s32 %s18, %s27
    %s38 = sor.u32 %s36, %s37
    %p39 = scmp.eq.s32.totalorder %s38, 0
    %s41 = sadd.s32 %s40, 1
    %s42 = scalar_select %p39, %s40, %s41
    %p45 = pneg %p39
    %p46 = scmp.eq.s32.totalorder %s9, 1
    %p47 = por %p45, %p46
    %p48 = scmp.ne.s32.totalorder %s40, %s43
    %p49 = scmp.eq.s32.totalorder %s9, 0
    %p50 = por %p48, %p49
    %p51 = scmp.ne.s32.totalorder %s40, %s43
    %p52 = scmp.eq.s32.totalorder %s14, 1
    %p53 = por %p51, %p52
    %p54 = scmp.ne.s32.totalorder %s43, %s44
    %p55 = scmp.eq.s32.totalorder %s14, 0
    %p56 = por %p54, %p55
    %p57 = scmp.ne.s32.totalorder %s43, %s44
    %p58 = scmp.eq.s32.totalorder %s15, 1
    %p59 = por %p57, %p58
    %p61 = scmp.ne.s32.totalorder %s44, %s60
    %p62 = scmp.eq.s32.totalorder %s15, 0
    %p63 = por %p61, %p62
    %s64 = ssub.s32 %s17, %s31
    %p65 = scmp.eq.s32.totalorder %s64, 0
    %s67 = sadd.s32 %s66, 1
    %s68 = scalar_select %p65, %s66, %s67
    %p71 = pneg %p65
    %p72 = scmp.eq.s32.totalorder %s9, 1
    %p73 = por %p71, %p72
    %p74 = scmp.ne.s32.totalorder %s66, %s69
    %p75 = scmp.eq.s32.totalorder %s9, 0
    %p76 = por %p74, %p75
    %p77 = scmp.ne.s32.totalorder %s66, %s69
    %p78 = scmp.eq.s32.totalorder %s14, 1
    %p79 = por %p77, %p78
    %p80 = scmp.ne.s32.totalorder %s69, %s70
    %p81 = scmp.eq.s32.totalorder %s14, 0
    %p82 = por %p80, %p81
    %p83 = scmp.ne.s32.totalorder %s69, %s70
    %p84 = scmp.eq.s32.totalorder %s15, 1
    %p85 = por %p83, %p84
    %p87 = scmp.ne.s32.totalorder %s70, %s86
    %p88 = scmp.eq.s32.totalorder %s15, 0
    %p89 = por %p87, %p88
    %s90 = ssub.s32 %s17, %s31
    %p91 = scmp.eq.s32.totalorder %s90, 0
    %s93 = sadd.s32 %s92, 1
    %s94 = scalar_select %p91, %s92, %s93
    %p97 = pneg %p91
    %p98 = scmp.eq.s32.totalorder %s9, 1
    %p99 = por %p97, %p98
    %p100 = scmp.ne.s32.totalorder %s92, %s95
    %p101 = scmp.eq.s32.totalorder %s9, 0
    %p102 = por %p100, %p101
    %p103 = scmp.ne.s32.totalorder %s92, %s95
    %p104 = scmp.eq.s32.totalorder %s14, 1
    %p105 = por %p103, %p104
    %p106 = scmp.ne.s32.totalorder %s95, %s96
    %p107 = scmp.eq.s32.totalorder %s14, 0
    %p108 = por %p106, %p107
    %p109 = scmp.ne.s32.totalorder %s95, %s96
    %p110 = scmp.eq.s32.totalorder %s15, 1
    %p111 = por %p109, %p110
    %p113 = scmp.ne.s32.totalorder %s96, %s112
    %p114 = scmp.eq.s32.totalorder %s15, 0
    %p115 = por %p113, %p114
    %s116 = ssub.s32 %s16, %s35
    %s117 = ssub.s32 %s18, %s27
    %s118 = sor.u32 %s116, %s117
    %s119 = ssub.s32 %s17, %s31
    %s120 = sor.u32 %s118, %s119
    %p121 = scmp.eq.s32.totalorder %s120, 0
    %s123 = sadd.s32 %s122, 1
    %s124 = scalar_select %p121, %s122, %s123
    %p127 = pneg %p121
    %p128 = scmp.eq.s32.totalorder %s9, 1
    %p129 = por %p127, %p128
    %p130 = scmp.ne.s32.totalorder %s122, %s125
    %p131 = scmp.eq.s32.totalorder %s9, 0
    %p132 = por %p130, %p131
    %p133 = scmp.ne.s32.totalorder %s122, %s125
    %p134 = scmp.eq.s32.totalorder %s14, 1
    %p135 = por %p133, %p134
    %p136 = scmp.ne.s32.totalorder %s125, %s126
    %p137 = scmp.eq.s32.totalorder %s14, 0
    %p138 = por %p136, %p137
    %p139 = scmp.ne.s32.totalorder %s125, %s126
    %p140 = scmp.eq.s32.totalorder %s15, 1
    %p141 = por %p139, %p140
    %p143 = scmp.ne.s32.totalorder %s126, %s142
    %p144 = scmp.eq.s32.totalorder %s15, 0
    %p145 = por %p143, %p144
    %p146 = scmp.le.s32.totalorder 1, %s9
    %p147 = scmp.lt.s32.totalorder %s9, 3
    %p148 = pnand %p146, %p147
    %p149 = pneg %p148
    // Predicated region
    $region9: #{inception_block_v1.1} parent=5 // pred_check
      _
    $region10: #{inception_block_v1.1} parent=5 // pred_check_branch
      %151 = sbr.rel (%p148) target = $region12
    $region11: #{inception_block_v1.1} parent=5 // pred_region
      %s152 = ssub.s32 %s9, 1
      // Predicated region
      $region13: #{inception_block_v1.1} parent=11 // pred_check
        %p153 = pneg %p82
      $region14: #{inception_block_v1.1} parent=11 // pred_check_branch
        %155 = sbr.rel (%p153) target = $region16
      $region15: #{inception_block_v1.1} parent=11 // pred_region
        %p156 = scmp.lt.s32.totalorder %s20, 0
        %s157 = scalar_select %p156, %s20, 0
        %s158 = smul.addr %s157, 4
        %s159 = scalar_lea.vmem %s1, %s158
      $region16: #{inception_block_v1.1} parent=11 // pred_fallthru
        _
      // Predicated region
      $region17: #{inception_block_v1.1} parent=11 // pred_check
        %p160 = pneg %p108
      $region18: #{inception_block_v1.1} parent=11 // pred_check_branch
        %162 = sbr.rel (%p160) target = $region20
      $region19: #{inception_block_v1.1} parent=11 // pred_region
        %p163 = scmp.lt.s32.totalorder %s20, 0
        %s164 = scalar_select %p163, %s20, 0
        %s165 = scalar_lea.vmem %s2, %s164
      $region20: #{inception_block_v1.1} parent=11 // pred_fallthru
        _
    $region12: #{inception_block_v1.1} parent=5 // pred_fallthru
      _
    %p166 = scmp.lt.s32.totalorder %s9, 2
    // Predicated region
    $region21: #{inception_block_v1.1} parent=5 // pred_check
      %p167 = pneg %p166
    $region22: #{inception_block_v1.1} parent=5 // pred_check_branch
      %169 = sbr.rel (%p167) target = $region24
    $region23: #{inception_block_v1.1} parent=5 // pred_region
      // Predicated region
      $region25: #{inception_block_v1.1} parent=23 // pred_check
        %p170 = pneg %p50
      $region26: #{inception_block_v1.1} parent=23 // pred_check_branch
        %172 = sbr.rel (%p170) target = $region28
      $region27: #{inception_block_v1.1} parent=23 // pred_region
        %s173 = smul.u32 32, %s18
        %p174 = scmp.lt.s32.totalorder %s16, 1
        %s175 = scalar_select %p174, %s16, 1
        %p176 = scmp.lt.s32.totalorder %s173, 31
        %s177 = scalar_select %p176, %s173, 31
        %s178 = smul.addr %s175, 32
        %s179 = sadd.s32 %s177, %s178
        %s180 = smul.addr %s179, 4
        %s181 = scalar_lea.vmem %s0, %s180
        %s182 = smul.u32 32, %s18
      $region28: #{inception_block_v1.1} parent=23 // pred_fallthru
        _
    $region24: #{inception_block_v1.1} parent=5 // pred_fallthru
      _
    %p183 = scmp.le.s32.totalorder 1, %s9
    %p184 = scmp.lt.s32.totalorder %s9, 3
    %p185 = pnand %p183, %p184
    %p186 = pneg %p185
    // Predicated region
    $region29: #{inception_block_v1.1} parent=5 // pred_check
      _
    $region30: #{inception_block_v1.1} parent=5 // pred_check_branch
      %188 = sbr.rel (%p185) target = $region32
    $region31: #{inception_block_v1.1} parent=5 // pred_region
      %s189 = ssub.s32 %s9, 1
      %s190 = smul.u32 32, %s21
      %p191 = scmp.lt.s32.totalorder %s19, 1
      %s192 = scalar_select %p191, %s19, 1
      %p193 = scmp.lt.s32.totalorder %s190, 31
      %s194 = scalar_select %p193, %s190, 31
      %s195 = smul.addr %s192, 32
      %s196 = sadd.s32 %s194, %s195
      %s197 = smul.addr %s196, 4
      %s198 = scalar_lea.vmem %s0, %s197
      %p199 = pneg %p56
      %p200 = pneg %p53
      %p201 = scmp.lt.s32.totalorder %s20, 0
      %s202 = scalar_select %p201, %s20, 0
      %s203 = smul.addr %s202, 4
      %s204 = scalar_lea.vmem %s1, %s203
      %p205 = pneg %p82
      %p206 = pneg %p79
      %p207 = scmp.lt.s32.totalorder %s20, 0
      %s208 = scalar_select %p207, %s20, 0
      %s209 = scalar_lea.vmem %s2, %s208
      %p210 = pneg %p108
      %p211 = pneg %p105
      %p212 = pneg %p138
      %p213 = pneg %p135
      %s214 = smul.u32 32, %s21
      %p215 = scmp.lt.s32.totalorder %s19, 1
      %s216 = scalar_select %p215, %s19, 1
      %p217 = scmp.lt.s32.totalorder %s214, 31
      %s218 = scalar_select %p217, %s214, 31
      %p219 = scmp.lt.s32.totalorder %s20, 0
      %s220 = scalar_select %p219, %s20, 0
      %s221 = sadd.s32 %s220, %s218
      %s222 = smul.addr %s216, 32
      %s223 = sadd.s32 %s221, %s222
      %s224 = smul.addr %s223, 8
      %s225 = scalar_lea.vmem %s3, %s224
      %s226 = smul.u32 32, %s21
      %p227 = scmp.lt.s32.totalorder %s19, 1
      %s228 = scalar_select %p227, %s19, 1
      %p229 = scmp.lt.s32.totalorder %s226, 31
      %s230 = scalar_select %p229, %s226, 31
      %s231 = smul.addr %s228, 32
      %s232 = sadd.s32 %s230, %s231
      %s233 = smul.addr %s232, 4
      %s234 = scalar_lea.vmem %s0, %s233
      %s235 = smul.u32 32, %s21
      %p236 = scmp.lt.s32.totalorder %s20, 0
      %s237 = scalar_select %p236, %s20, 0
      %s238 = smul.addr %s237, 4
      %s239 = scalar_lea.vmem %s1, %s238
      %p240 = scmp.lt.s32.totalorder %s20, 0
      %s241 = scalar_select %p240, %s20, 0
      %s242 = scalar_lea.vmem %s2, %s241
      %s243 = smul.u32 32, %s21
      %p244 = scmp.lt.s32.totalorder %s19, 1
      %s245 = scalar_select %p244, %s19, 1
      %p246 = scmp.lt.s32.totalorder %s243, 31
      %s247 = scalar_select %p246, %s243, 31
      %p248 = scmp.lt.s32.totalorder %s20, 0
      %s249 = scalar_select %p248, %s20, 0
      %s250 = sadd.s32 %s249, %s247
      %s251 = smul.addr %s245, 32
      %s252 = sadd.s32 %s250, %s251
      %s253 = smul.addr %s252, 8
      %s254 = scalar_lea.vmem %s3, %s253
      %s255 = smul.u32 32, %s21
      %v256 = vld [vmem:[%s234] sm:$0xf]
      %v257 = vld [vmem:[%s234 + $0x4] sm:$0xf]
      %v258 = vld [vmem:[%s234 + $0x8] sm:$0xf]
      %v259 = vld [vmem:[%s234 + $0xc] sm:$0xf]
      %v260 = vld [vmem:[%s234 + $0x10] sm:$0xf]
      %v261 = vld [vmem:[%s234 + $0x14] sm:$0xf]
      %v262 = vld [vmem:[%s234 + $0x18] sm:$0xf]
      %v263 = vld [vmem:[%s234 + $0x1c] sm:$0xf]
      %v264 = vld [vmem:[%s234 + $0x20] sm:$0xf]
      %v265 = vld [vmem:[%s234 + $0x24] sm:$0xf]
      %v266 = vld [vmem:[%s234 + $0x28] sm:$0xf]
      %v267 = vld [vmem:[%s234 + $0x2c] sm:$0xf]
      %v268 = vld [vmem:[%s234 + $0x30] sm:$0xf]
      %v269 = vld [vmem:[%s234 + $0x34] sm:$0xf]
      %v270 = vld [vmem:[%s234 + $0x38] sm:$0xf]
      %v271 = vld [vmem:[%s234 + $0x3c] sm:$0xf]
      %v272 = vld [vmem:[%s234 + $0x40] sm:$0xf]
      %v273 = vld [vmem:[%s234 + $0x44] sm:$0xf]
      %v274 = vld [vmem:[%s234 + $0x48] sm:$0xf]
      %v275 = vld [vmem:[%s234 + $0x4c] sm:$0xf]
      %v276 = vld [vmem:[%s234 + $0x50] sm:$0xf]
      %v277 = vld [vmem:[%s234 + $0x54] sm:$0xf]
      %v278 = vld [vmem:[%s234 + $0x58] sm:$0xf]
      %v279 = vld [vmem:[%s234 + $0x5c] sm:$0xf]
      %v280 = vld [vmem:[%s234 + $0x60] sm:$0xf]
      %v281 = vld [vmem:[%s234 + $0x64] sm:$0xf]
      %v282 = vld [vmem:[%s234 + $0x68] sm:$0xf]
      %v283 = vld [vmem:[%s234 + $0x6c] sm:$0xf]
      %v284 = vld [vmem:[%s234 + $0x70] sm:$0xf]
      %v285 = vld [vmem:[%s234 + $0x74] sm:$0xf]
      %v286 = vld [vmem:[%s234 + $0x78] sm:$0xf]
      %v287 = vld [vmem:[%s234 + $0x7c] sm:$0xf]
      %v288 = vld [vmem:[%s239] sm:$0xf]
      %v289 = vld [vmem:[%s239 + $0x4] sm:$0xf]
      %v290 = vld [vmem:[%s239 + $0x8] sm:$0xf]
      %v291 = vld [vmem:[%s239 + $0xc] sm:$0xf]
      %v292 = vld [vmem:[%s239 + $0x10] sm:$0xf]
      %v293 = vld [vmem:[%s239 + $0x14] sm:$0xf]
      %v294 = vld [vmem:[%s239 + $0x18] sm:$0xf]
      %v295 = vld [vmem:[%s239 + $0x1c] sm:$0xf]
      %v296 = vld [vmem:[%s239 + $0x20] sm:$0xf]
      %v297 = vld [vmem:[%s239 + $0x24] sm:$0xf]
      %v298 = vld [vmem:[%s239 + $0x28] sm:$0xf]
      %v299 = vld [vmem:[%s239 + $0x2c] sm:$0xf]
      %v300 = vld [vmem:[%s239 + $0x30] sm:$0xf]
      %v301 = vld [vmem:[%s239 + $0x34] sm:$0xf]
      %v302 = vld [vmem:[%s239 + $0x38] sm:$0xf]
      %v303 = vld [vmem:[%s239 + $0x3c] sm:$0xf]
      %v304 = vld [vmem:[%s242] sm:$0x1]
      %v306 = vperm.slane %v304, 0
      %v340 = vunpack.c.l.b16 %v256
      %v341 = vunpack.c.l.b16 %v257
      %v342 = vunpack.c.l.b16 %v258
      %v343 = vunpack.c.l.b16 %v259
      %v344 = vunpack.c.l.b16 %v260
      %v345 = vunpack.c.l.b16 %v261
      %v346 = vunpack.c.l.b16 %v262
      %v347 = vunpack.c.l.b16 %v263
      %v348 = vunpack.c.l.b16 %v264
      %v349 = vunpack.c.l.b16 %v265
      %v350 = vunpack.c.l.b16 %v266
      %v351 = vunpack.c.l.b16 %v267
      %v352 = vunpack.c.l.b16 %v268
      %v353 = vunpack.c.l.b16 %v269
      %v354 = vunpack.c.l.b16 %v270
      %v355 = vunpack.c.l.b16 %v271
      %v356 = vunpack.c.l.b16 %v272
      %v357 = vunpack.c.l.b16 %v273
      %v358 = vunpack.c.l.b16 %v274
      %v359 = vunpack.c.l.b16 %v275
      %v360 = vunpack.c.l.b16 %v276
      %v361 = vunpack.c.l.b16 %v277
      %v362 = vunpack.c.l.b16 %v278
      %v363 = vunpack.c.l.b16 %v279
      %v364 = vunpack.c.l.b16 %v280
      %v365 = vunpack.c.l.b16 %v281
      %v366 = vunpack.c.l.b16 %v282
      %v367 = vunpack.c.l.b16 %v283
      %v368 = vunpack.c.l.b16 %v284
      %v369 = vunpack.c.l.b16 %v285
      %v370 = vunpack.c.l.b16 %v286
      %v371 = vunpack.c.l.b16 %v287
      %v372 = vpack.c.b16 %v341, %v340
      %v373 = vpack.c.b16 %v343, %v342
      %v374 = vpack.c.b16 %v345, %v344
      %v375 = vpack.c.b16 %v347, %v346
      %v376 = vpack.c.b16 %v349, %v348
      %v377 = vpack.c.b16 %v351, %v350
      %v378 = vpack.c.b16 %v353, %v352
      %v379 = vpack.c.b16 %v355, %v354
      %v380 = vpack.c.b16 %v357, %v356
      %v381 = vpack.c.b16 %v359, %v358
      %v382 = vpack.c.b16 %v361, %v360
      %v383 = vpack.c.b16 %v363, %v362
      %v384 = vpack.c.b16 %v365, %v364
      %v385 = vpack.c.b16 %v367, %v366
      %v386 = vpack.c.b16 %v369, %v368
      %v387 = vpack.c.b16 %v371, %v370
      %v420 = vunpack.c.l.b16 %v288
      %v421 = vunpack.c.l.b16 %v289
      %v422 = vunpack.c.l.b16 %v290
      %v423 = vunpack.c.l.b16 %v291
      %v424 = vunpack.c.l.b16 %v292
      %v425 = vunpack.c.l.b16 %v293
      %v426 = vunpack.c.l.b16 %v294
      %v427 = vunpack.c.l.b16 %v295
      %v428 = vunpack.c.l.b16 %v296
      %v429 = vunpack.c.l.b16 %v297
      %v430 = vunpack.c.l.b16 %v298
      %v431 = vunpack.c.l.b16 %v299
      %v432 = vunpack.c.l.b16 %v300
      %v433 = vunpack.c.l.b16 %v301
      %v434 = vunpack.c.l.b16 %v302
      %v435 = vunpack.c.l.b16 %v303
      %v436 = vpack.c.b16 %v421, %v420
      %v437 = vpack.c.b16 %v423, %v422
      %v438 = vpack.c.b16 %v425, %v424
      %v439 = vpack.c.b16 %v427, %v426
      %v440 = vpack.c.b16 %v429, %v428
      %v441 = vpack.c.b16 %v431, %v430
      %v442 = vpack.c.b16 %v433, %v432
      %v443 = vpack.c.b16 %v435, %v434
      %452 = vmatpush.bf16.msra.mxu0 %v443
      %453 = vmatpush.bf16.msra.mxu0 %v442
      %454 = vmatpush.bf16.msra.mxu0 %v441
      %455 = vmatpush.bf16.msra.mxu0 %v440
      %456 = vmatpush.bf16.msra.mxu0 %v439
      %457 = vmatpush.bf16.msra.mxu0 %v438
      %458 = vmatpush.bf16.msra.mxu0 %v437
      %459 = vmatpush.bf16.msra.mxu0 %v436
      %460 = vmatmul.bf16.gmra.mxu0 %v372
      %v461 = vpop.f32.mrf.mxu0
      %v462 = vadd.f32 %v306, %v461
      %v463 = vpop.f32.mrf.mxu0
      %v464 = vadd.f32 %v306, %v463
      %465 = vmatmul.bf16.gmra.mxu0 %v373
      %v466 = vpop.f32.mrf.mxu0
      %v467 = vadd.f32 %v306, %v466
      %v468 = vpop.f32.mrf.mxu0
      %v469 = vadd.f32 %v306, %v468
      %470 = vmatmul.bf16.gmra.mxu0 %v374
      %v471 = vpop.f32.mrf.mxu0
      %v472 = vadd.f32 %v306, %v471
      %v473 = vpop.f32.mrf.mxu0
      %v474 = vadd.f32 %v306, %v473
      %475 = vmatmul.bf16.gmra.mxu0 %v375
      %v476 = vpop.f32.mrf.mxu0
      %v477 = vadd.f32 %v306, %v476
      %v478 = vpop.f32.mrf.mxu0
      %v479 = vadd.f32 %v306, %v478
      %480 = vmatmul.bf16.gmra.mxu0 %v376
      %v481 = vpop.f32.mrf.mxu0
      %v482 = vadd.f32 %v306, %v481
      %v483 = vpop.f32.mrf.mxu0
      %v484 = vadd.f32 %v306, %v483
      %485 = vmatmul.bf16.gmra.mxu0 %v377
      %v486 = vpop.f32.mrf.mxu0
      %v487 = vadd.f32 %v306, %v486
      %v488 = vpop.f32.mrf.mxu0
      %v489 = vadd.f32 %v306, %v488
      %490 = vmatmul.bf16.gmra.mxu0 %v378
      %v491 = vpop.f32.mrf.mxu0
      %v492 = vadd.f32 %v306, %v491
      %v493 = vpop.f32.mrf.mxu0
      %v494 = vadd.f32 %v306, %v493
      %495 = vmatmul.bf16.gmra.mxu0 %v379
      %v496 = vpop.f32.mrf.mxu0
      %v497 = vadd.f32 %v306, %v496
      %v498 = vpop.f32.mrf.mxu0
      %v499 = vadd.f32 %v306, %v498
      %500 = vmatmul.bf16.gmra.mxu0 %v380
      %v501 = vpop.f32.mrf.mxu0
      %v502 = vadd.f32 %v306, %v501
      %v503 = vpop.f32.mrf.mxu0
      %v504 = vadd.f32 %v306, %v503
      %505 = vmatmul.bf16.gmra.mxu0 %v381
      %v506 = vpop.f32.mrf.mxu0
      %v507 = vadd.f32 %v306, %v506
      %v508 = vpop.f32.mrf.mxu0
      %v509 = vadd.f32 %v306, %v508
      %510 = vmatmul.bf16.gmra.mxu0 %v382
      %v511 = vpop.f32.mrf.mxu0
      %v512 = vadd.f32 %v306, %v511
      %v513 = vpop.f32.mrf.mxu0
      %v514 = vadd.f32 %v306, %v513
      %515 = vmatmul.bf16.gmra.mxu0 %v383
      %v516 = vpop.f32.mrf.mxu0
      %v517 = vadd.f32 %v306, %v516
      %v518 = vpop.f32.mrf.mxu0
      %v519 = vadd.f32 %v306, %v518
      %520 = vmatmul.bf16.gmra.mxu0 %v384
      %v521 = vpop.f32.mrf.mxu0
      %v522 = vadd.f32 %v306, %v521
      %v523 = vpop.f32.mrf.mxu0
      %v524 = vadd.f32 %v306, %v523
      %525 = vmatmul.bf16.gmra.mxu0 %v385
      %v526 = vpop.f32.mrf.mxu0
      %v527 = vadd.f32 %v306, %v526
      %v528 = vpop.f32.mrf.mxu0
      %v529 = vadd.f32 %v306, %v528
      %530 = vmatmul.bf16.gmra.mxu0 %v386
      %v531 = vpop.f32.mrf.mxu0
      %v532 = vadd.f32 %v306, %v531
      %v533 = vpop.f32.mrf.mxu0
      %v534 = vadd.f32 %v306, %v533
      %535 = vmatmul.bf16.gmra.mxu0 %v387
      %v536 = vpop.f32.mrf.mxu0
      %v537 = vadd.f32 %v306, %v536
      %v538 = vpop.f32.mrf.mxu0
      %v539 = vadd.f32 %v306, %v538
      %540 = vdwg.mxu0
      %541 = vst [vmem:[%s254] sm:$0xff] %v462
      %542 = vst [vmem:[%s254 + $0x8] sm:$0xff] %v464
      %543 = vst [vmem:[%s254 + $0x10] sm:$0xff] %v467
      %544 = vst [vmem:[%s254 + $0x18] sm:$0xff] %v469
      %545 = vst [vmem:[%s254 + $0x20] sm:$0xff] %v472
      %546 = vst [vmem:[%s254 + $0x28] sm:$0xff] %v474
      %547 = vst [vmem:[%s254 + $0x30] sm:$0xff] %v477
      %548 = vst [vmem:[%s254 + $0x38] sm:$0xff] %v479
      %549 = vst [vmem:[%s254 + $0x40] sm:$0xff] %v482
      %550 = vst [vmem:[%s254 + $0x48] sm:$0xff] %v484
      %551 = vst [vmem:[%s254 + $0x50] sm:$0xff] %v487
      %552 = vst [vmem:[%s254 + $0x58] sm:$0xff] %v489
      %553 = vst [vmem:[%s254 + $0x60] sm:$0xff] %v492
      %554 = vst [vmem:[%s254 + $0x68] sm:$0xff] %v494
      %555 = vst [vmem:[%s254 + $0x70] sm:$0xff] %v497
      %556 = vst [vmem:[%s254 + $0x78] sm:$0xff] %v499
      %557 = vst [vmem:[%s254 + $0x80] sm:$0xff] %v502
      %558 = vst [vmem:[%s254 + $0x88] sm:$0xff] %v504
      %559 = vst [vmem:[%s254 + $0x90] sm:$0xff] %v507
      %560 = vst [vmem:[%s254 + $0x98] sm:$0xff] %v509
      %561 = vst [vmem:[%s254 + $0xa0] sm:$0xff] %v512
      %562 = vst [vmem:[%s254 + $0xa8] sm:$0xff] %v514
      %563 = vst [vmem:[%s254 + $0xb0] sm:$0xff] %v517
      %564 = vst [vmem:[%s254 + $0xb8] sm:$0xff] %v519
      %565 = vst [vmem:[%s254 + $0xc0] sm:$0xff] %v522
      %566 = vst [vmem:[%s254 + $0xc8] sm:$0xff] %v524
      %567 = vst [vmem:[%s254 + $0xd0] sm:$0xff] %v527
      %568 = vst [vmem:[%s254 + $0xd8] sm:$0xff] %v529
      %569 = vst [vmem:[%s254 + $0xe0] sm:$0xff] %v532
      %570 = vst [vmem:[%s254 + $0xe8] sm:$0xff] %v534
      %571 = vst [vmem:[%s254 + $0xf0] sm:$0xff] %v537
      %572 = vst [vmem:[%s254 + $0xf8] sm:$0xff] %v539
      %s573 = smul.u32 32, %s21
      %p574 = scmp.lt.s32.totalorder %s19, 1
      %s575 = scalar_select %p574, %s19, 1
      %p576 = scmp.lt.s32.totalorder %s573, 31
      %s577 = scalar_select %p576, %s573, 31
      %p578 = scmp.lt.s32.totalorder %s20, 0
      %s579 = scalar_select %p578, %s20, 0
      %s580 = sadd.s32 %s579, %s577
      %s581 = smul.addr %s575, 32
      %s582 = sadd.s32 %s580, %s581
      %s583 = smul.addr %s582, 8
      %s584 = scalar_lea.vmem %s3, %s583
      // Predicated region
      $region33: #{inception_block_v1.1} parent=31 // pred_check
        %p585 = pneg %p135
      $region34: #{inception_block_v1.1} parent=31 // pred_check_branch
        %587 = sbr.rel (%p585) target = $region36
      $region35: #{inception_block_v1.1} parent=31 // pred_region
        %s588 = smul.u32 32, %s21
      $region36: #{inception_block_v1.1} parent=31 // pred_fallthru
        _
    $region32: #{inception_block_v1.1} parent=5 // pred_fallthru
      _
    %p589 = scmp.le.s32.totalorder 2, %s9
    // Predicated region
    $region37: #{inception_block_v1.1} parent=5 // pred_check
      %p590 = pneg %p589
    $region38: #{inception_block_v1.1} parent=5 // pred_check_branch
      %592 = sbr.rel (%p590) target = $region40
    $region39: #{inception_block_v1.1} parent=5 // pred_region
      %s593 = ssub.s32 %s9, 2
      // Predicated region
      $region41: #{inception_block_v1.1} parent=39 // pred_check
        %p594 = pneg %p141
      $region42: #{inception_block_v1.1} parent=39 // pred_check_branch
        %596 = sbr.rel (%p594) target = $region44
      $region43: #{inception_block_v1.1} parent=39 // pred_region
        %s597 = smul.u32 32, %s24
        %p598 = scmp.lt.s32.totalorder %s22, 1
        %s599 = scalar_select %p598, %s22, 1
        %p600 = scmp.lt.s32.totalorder %s597, 31
        %s601 = scalar_select %p600, %s597, 31
        %p602 = scmp.lt.s32.totalorder %s23, 0
        %s603 = scalar_select %p602, %s23, 0
        %s604 = sadd.s32 %s603, %s601
        %s605 = smul.addr %s599, 32
        %s606 = sadd.s32 %s604, %s605
        %s607 = smul.addr %s606, 8
        %s608 = scalar_lea.vmem %s3, %s607
      $region44: #{inception_block_v1.1} parent=39 // pred_fallthru
        _
    $region40: #{inception_block_v1.1} parent=5 // pred_fallthru
      _
  $region6: #{inception_block_v1.1} parent=0 // loop_footer
    %s13 = sadd.s32 1, %s9
  $region7: #{inception_block_v1.1} parent=0 // loop_footer_branch
    %8 = sbr.rel target = $region3
  $region8: #{inception_block_v1.1} parent=0 // loop_exit
    _

</llo_original>
